<compile_context>
chip_gen: v5e
topology: v5e:2x2
jax: 0.10.0
libtpu: 0.0.40
codegen_flags: <defaults>
</compile_context>

<pallas_src>
import jax
import jax.numpy as jnp
from jax.experimental import pallas as pl
from jax.experimental.pallas import tpu as pltpu

D = 64             # model / embedding dimension (output_dimension)
V = 64             # num_embeddings == output_dimension
S = 16             # sequence length (small example)
N_OUT = 3          # final_layer out_features
N_OUT_PAD = 128    # pad final head to a lane-dense width; sliced back to 3 in wrapper
QKV_PAD = 3 * 128  # fused QKV weight padded so Q/K/V each start on a 128-lane boundary


def transformer_kernel(tok_ref, pe_ref, wqkv_ref, wstack_ref, bstack_ref, out_ref):
    seq = tok_ref.shape[0]
    f32 = jnp.float32
    bf16 = jnp.bfloat16

    # ---- unpack packed parameters (static, tile-aligned slices) --------------
    b = bstack_ref[...]                       # [16, 128] f32
    bq = b[0:1, 0:D]                          # 1/sqrt(64) already folded in
    bk = b[1:2, 0:D]
    bv = b[2:3, 0:D]
    bo = b[3:4, 0:D]
    b1 = b[4:5, 0:D]
    b2 = b[5:6, 0:D]
    b_fin = b[6:7, :]                         # [1, 128] (cols >= 3 are zero)
    gamma = b[7:8, 0:D]
    beta = b[8:9, 0:D]

    emb = wstack_ref[0:64, 0:D]               # bf16 [64, 64]
    wo = wstack_ref[64:128, 0:D]
    w1 = wstack_ref[128:192, 0:D]
    w2 = wstack_ref[192:256, 0:D]
    wf = wstack_ref[256:320, :]               # bf16 [64, 128]

    # ---- embedding lookup fused in-kernel as a one-hot matmul (MXU) ----------
    tok = tok_ref[...]                                            # [S, 1] int32
    ids = jax.lax.broadcasted_iota(jnp.int32, (seq, V), 1)        # [S, V]
    onehot = (ids == tok).astype(f32).astype(bf16)                # bool->f32->bf16
    x_emb = jnp.dot(onehot, emb, preferred_element_type=f32)      # [S, D] f32

    # x1 = dropout(embedding + positional_encoding); dropout == identity (eval)
    x1 = x_emb + pe_ref[...]

    # ---- fused, lane-aligned Q/K/V projection ---------------------------------
    qkv = jnp.dot(x1.astype(bf16), wqkv_ref[...], preferred_element_type=f32)  # [S, 384]
    q = qkv[:, 0:D] + bq                      # Q columns carry the 1/sqrt(64) scale
    k = qkv[:, 128:128 + D] + bk
    v = qkv[:, 256:256 + D] + bv

    # ---- scaled dot-product attention (no explicit K transpose) ---------------
    scores = jax.lax.dot_general(q.astype(bf16), k.astype(bf16),
                                 (((1,), (1,)), ((), ())),
                                 preferred_element_type=f32)      # [S, S]
    m = jnp.max(scores, axis=-1, keepdims=True)
    e = jnp.exp(scores - m)
    denom_inv = pl.reciprocal(jnp.sum(e, axis=-1, keepdims=True), approx=True)
    attn = e * denom_inv                                          # softmax(dim=-1)
    x2 = jnp.dot(attn.astype(bf16), v.astype(bf16), preferred_element_type=f32)
    # final_self_attention_linear ; dropout == identity
    x2 = jnp.dot(x2.astype(bf16), wo, preferred_element_type=f32) + bo

    def layer_norm(t):
        # Global mean + UNBIASED variance over the whole [S, D] tensor (matches
        # torch .mean()/.var() with no dim); eps added OUTSIDE the sqrt.
        # sum and sum-of-squares share a single lane (XLU) reduce.
        n = float(t.shape[0] * t.shape[1])
        stacked = jnp.concatenate([t, t * t], axis=0)             # [2S, D]
        lane = jnp.sum(stacked, axis=1, keepdims=True)            # [2S, 1]
        s = jnp.sum(lane[0:seq, :], axis=0, keepdims=True)        # [1, 1]
        sq = jnp.sum(lane[seq:2 * seq, :], axis=0, keepdims=True) # [1, 1]
        mean = s * (1.0 / n)
        var = (sq - n * mean * mean) * (1.0 / (n - 1.0))          # unbiased
        inv_std = 1.0 / (jnp.sqrt(var) + 1e-9)                    # exact divide ([1,1])
        return gamma * ((t - mean) * inv_std) + beta

    # residual + layer norm
    x3 = layer_norm(x1 + x2)

    # feed-forward: linear1 -> ReLU -> linear2 ; dropout == identity
    x4 = jnp.dot(x3.astype(bf16), w1, preferred_element_type=f32) + b1
    x4 = jnp.maximum(x4, 0.0)
    x4 = jnp.dot(x4.astype(bf16), w2, preferred_element_type=f32) + b2

    # residual + layer norm
    x5 = layer_norm(x3 + x4)

    # final head (padded to 128 lanes -> unmasked lane-dense store)
    out_ref[...] = jnp.dot(x5.astype(bf16), wf, preferred_element_type=f32) + b_fin


def positional_encoding(seq_len, dim):
    # Reproduces the reference exactly: exponent 2*i/dim for EVERY i,
    # sin for even i, cos for odd i.
    pos = jnp.arange(seq_len, dtype=jnp.float32)[:, None]
    i = jnp.arange(dim, dtype=jnp.float32)[None, :]
    angle = pos / (10000.0 ** (2.0 * i / dim))
    even = (jnp.arange(dim) % 2 == 0)[None, :]
    return jnp.where(even, jnp.sin(angle), jnp.cos(angle)).astype(jnp.float32)


def init_params(key):
    # "PyTorch-like" unfused f32 parameters (what the nn.Module would hold).
    ks = jax.random.split(key, 8)

    def linear(k, din, dout):
        kw, kb = jax.random.split(k)
        w = jax.random.normal(kw, (din, dout), jnp.float32) * 0.02   # stored [in, out]
        b = jax.random.normal(kb, (dout,), jnp.float32) * 0.02
        return w, b

    p = {}
    p["emb"] = jax.random.normal(ks[0], (V, D), jnp.float32) * 0.02
    p["wq"], p["bq"] = linear(ks[1], D, D)
    p["wk"], p["bk"] = linear(ks[2], D, D)
    p["wv"], p["bv"] = linear(ks[3], D, D)
    p["wo"], p["bo"] = linear(ks[4], D, D)
    p["w1"], p["b1"] = linear(ks[5], D, D)
    p["w2"], p["b2"] = linear(ks[6], D, D)
    p["wf"], p["bf"] = linear(ks[7], D, N_OUT)
    p["gamma"] = jnp.ones((D,), jnp.float32)    # nn.Parameter(torch.ones(D))
    p["beta"] = jnp.zeros((D,), jnp.float32)    # nn.Parameter(torch.zeros(D))
    return p


def pack_params(p, seq_len):
    """One-time packing into the 4 kernel-ready buffers (+ precomputed PE table)."""
    scale = 1.0 / (64.0 ** 0.5)   # dkey=64 default in ScaledDotProductAttention

    # Fused QKV weight, lane-aligned: Q -> cols 0:64, K -> 128:192, V -> 256:320.
    wqkv = jnp.zeros((D, QKV_PAD), jnp.float32)
    wqkv = wqkv.at[:, 0:D].set(p["wq"] * scale)
    wqkv = wqkv.at[:, 128:128 + D].set(p["wk"])
    wqkv = wqkv.at[:, 256:256 + D].set(p["wv"])

    def pad_cols(w, width=128):
        return jnp.zeros((w.shape[0], width), jnp.float32).at[:, :w.shape[1]].set(w)

    def pad_row(vec, width=128):
        return jnp.zeros((1, width), jnp.float32).at[0, :vec.shape[0]].set(vec)

    wstack = jnp.concatenate(
        [pad_cols(p["emb"]), pad_cols(p["wo"]), pad_cols(p["w1"]),
         pad_cols(p["w2"]), pad_cols(p["wf"])], axis=0)              # [320, 128]

    bstack = jnp.concatenate(
        [pad_row(p["bq"] * scale), pad_row(p["bk"]), pad_row(p["bv"]),
         pad_row(p["bo"]), pad_row(p["b1"]), pad_row(p["b2"]),
         pad_row(p["bf"]), pad_row(p["gamma"]), pad_row(p["beta"]),
         jnp.zeros((7, 128), jnp.float32)], axis=0)                  # [16, 128]

    return {
        "pe": positional_encoding(seq_len, D),       # [S, D] f32 baked-in constant
        "wqkv": wqkv.astype(jnp.bfloat16),           # weights pre-cast for the MXU
        "wstack": wstack.astype(jnp.bfloat16),
        "bstack": bstack,                            # biases / gamma / beta stay f32
    }


@jax.jit
def transformer_forward(tokens, packed):
    seq = tokens.shape[0]
    tok2d = tokens.reshape(seq, 1).astype(jnp.int32)
    vmem = pl.BlockSpec(memory_space=pltpu.MemorySpace.VMEM)
    # No grid: at S=16 / D=64 the whole forward (< 0.2 MiB) is VMEM-resident.
    # TODO(synk): for large S or a batch dimension, switch to a gridded
    # (flash-attention style) layout with dimension_semantics=("parallel", ...)
    # so v7x's second TensorCore is used and its 64 MiB VMEM budget is respected.
    out_padded = pl.pallas_call(
        transformer_kernel,
        out_shape=jax.ShapeDtypeStruct((seq, N_OUT_PAD), jnp.float32),
        in_specs=[vmem] * 5,
        out_specs=vmem,
    )(tok2d, packed["pe"], packed["wqkv"], packed["wstack"], packed["bstack"])
    # Slice the lane-dense [S, 128] result to the 3 real columns (still inside jit).
    return out_padded[:, :N_OUT]


def transformer_reference(tokens, p):
    # Pure-JAX f32 reference with the module's exact semantics (tolerance check).
    x1 = jnp.take(p["emb"], tokens, axis=0) + positional_encoding(tokens.shape[0], D)
    q = x1 @ p["wq"] + p["bq"]
    k = x1 @ p["wk"] + p["bk"]
    v = x1 @ p["wv"] + p["bv"]
    attn = jax.nn.softmax((q @ k.T) / (64.0 ** 0.5), axis=-1)
    x2 = (attn @ v) @ p["wo"] + p["bo"]

    def ln(t):
        mean = t.mean()
        var = t.var(ddof=1)                          # torch .var(): unbiased
        return p["gamma"] * ((t - mean) / (jnp.sqrt(var) + 1e-9)) + p["beta"]

    x3 = ln(x1 + x2)
    x4 = jnp.maximum(x3 @ p["w1"] + p["b1"], 0.0) @ p["w2"] + p["b2"]
    x5 = ln(x3 + x4)
    return x5 @ p["wf"] + p["bf"]


if __name__ == "__main__":
    key = jax.random.PRNGKey(0)
    tok_key, param_key = jax.random.split(key)
    tokens = jax.random.randint(tok_key, (S,), 0, V, dtype=jnp.int32)

    params = init_params(param_key)
    packed = pack_params(params, S)

    out = transformer_forward(tokens, packed)
    out = jax.block_until_ready(out)

    assert out.shape == (S, N_OUT), out.shape
    assert out.dtype == jnp.float32

    ref = transformer_reference(tokens, params)
    # bf16 MXU operands + approx softmax reciprocal -> small drift vs the exact
    # f32 reference; comfortably inside 2e-2.
    err = float(jnp.max(jnp.abs(out - ref)))
    assert jnp.allclose(out, ref, atol=2e-2, rtol=2e-2), err

    print("KERNEL_OK")
</pallas_src>

<mosaic_0001>
module attributes {stable_mosaic.version = 11 : i64} {
  func.func @transformer_kernel(%arg0: memref<16x1xi32, #tpu.memory_space<vmem>>, %arg1: memref<16x64xf32, #tpu.memory_space<vmem>>, %arg2: memref<64x384xbf16, #tpu.memory_space<vmem>>, %arg3: memref<320x128xbf16, #tpu.memory_space<vmem>>, %arg4: memref<16x128xf32, #tpu.memory_space<vmem>>, %arg5: memref<16x128xf32, #tpu.memory_space<vmem>>) attributes {dimension_semantics = [], scalar_prefetch = 0 : i64, scratch_operands = 0 : i64, tpu.core_type = #tpu.core_type<tc>} {
    %c0 = arith.constant 0 : index
    %c0_0 = arith.constant 0 : index
    %0 = vector.load %arg4[%c0, %c0_0] : memref<16x128xf32, #tpu.memory_space<vmem>>, vector<16x128xf32>
    %1 = vector.extract_strided_slice %0 {offsets = [0, 0], sizes = [1, 64], strides = [1, 1]} : vector<16x128xf32> to vector<1x64xf32>
    %2 = vector.extract_strided_slice %0 {offsets = [1, 0], sizes = [1, 64], strides = [1, 1]} : vector<16x128xf32> to vector<1x64xf32>
    %3 = vector.extract_strided_slice %0 {offsets = [2, 0], sizes = [1, 64], strides = [1, 1]} : vector<16x128xf32> to vector<1x64xf32>
    %4 = vector.extract_strided_slice %0 {offsets = [3, 0], sizes = [1, 64], strides = [1, 1]} : vector<16x128xf32> to vector<1x64xf32>
    %5 = vector.extract_strided_slice %0 {offsets = [4, 0], sizes = [1, 64], strides = [1, 1]} : vector<16x128xf32> to vector<1x64xf32>
    %6 = vector.extract_strided_slice %0 {offsets = [5, 0], sizes = [1, 64], strides = [1, 1]} : vector<16x128xf32> to vector<1x64xf32>
    %7 = vector.extract_strided_slice %0 {offsets = [6, 0], sizes = [1, 128], strides = [1, 1]} : vector<16x128xf32> to vector<1x128xf32>
    %8 = vector.extract_strided_slice %0 {offsets = [7, 0], sizes = [1, 64], strides = [1, 1]} : vector<16x128xf32> to vector<1x64xf32>
    %9 = vector.extract_strided_slice %0 {offsets = [8, 0], sizes = [1, 64], strides = [1, 1]} : vector<16x128xf32> to vector<1x64xf32>
    %c0_1 = arith.constant 0 : index
    %c0_2 = arith.constant 0 : index
    %10 = vector.load %arg3[%c0_1, %c0_2] : memref<320x128xbf16, #tpu.memory_space<vmem>>, vector<64x64xbf16>
    %c64 = arith.constant 64 : index
    %c0_3 = arith.constant 0 : index
    %11 = vector.load %arg3[%c64, %c0_3] : memref<320x128xbf16, #tpu.memory_space<vmem>>, vector<64x64xbf16>
    %c128 = arith.constant 128 : index
    %c0_4 = arith.constant 0 : index
    %12 = vector.load %arg3[%c128, %c0_4] : memref<320x128xbf16, #tpu.memory_space<vmem>>, vector<64x64xbf16>
    %c192 = arith.constant 192 : index
    %c0_5 = arith.constant 0 : index
    %13 = vector.load %arg3[%c192, %c0_5] : memref<320x128xbf16, #tpu.memory_space<vmem>>, vector<64x64xbf16>
    %c256 = arith.constant 256 : index
    %c0_6 = arith.constant 0 : index
    %14 = vector.load %arg3[%c256, %c0_6] : memref<320x128xbf16, #tpu.memory_space<vmem>>, vector<64x128xbf16>
    %c0_7 = arith.constant 0 : index
    %c0_8 = arith.constant 0 : index
    %15 = vector.load %arg0[%c0_7, %c0_8] : memref<16x1xi32, #tpu.memory_space<vmem>>, vector<16x1xi32>
    %16 = tpu.iota {dimensions = array<i32: 1>} : vector<16x64xi32>
    %17 = vector.broadcast %15 : vector<16x1xi32> to vector<16x64xi32>
    %18 = arith.cmpi eq, %16, %17 : vector<16x64xi32>
    %19 = arith.extui %18 : vector<16x64xi1> to vector<16x64xi32>
    %20 = arith.sitofp %19 : vector<16x64xi32> to vector<16x64xf32>
    %21 = arith.truncf %20 : vector<16x64xf32> to vector<16x64xbf16>
    %cst = arith.constant dense<0.000000e+00> : vector<16x64xf32>
    %22 = tpu.matmul %21, %10, %cst {dimension_numbers = #tpu.dot_dimension_numbers<[1], [0], [0], [1], [0, 0, 1, 1], [], []>} : vector<16x64xbf16>, vector<64x64xbf16>, vector<16x64xf32> -> vector<16x64xf32>
    %c0_9 = arith.constant 0 : index
    %c0_10 = arith.constant 0 : index
    %23 = vector.load %arg1[%c0_9, %c0_10] : memref<16x64xf32, #tpu.memory_space<vmem>>, vector<16x64xf32>
    %24 = arith.addf %22, %23 : vector<16x64xf32>
    %25 = arith.truncf %24 : vector<16x64xf32> to vector<16x64xbf16>
    %c0_11 = arith.constant 0 : index
    %c0_12 = arith.constant 0 : index
    %26 = vector.load %arg2[%c0_11, %c0_12] : memref<64x384xbf16, #tpu.memory_space<vmem>>, vector<64x384xbf16>
    %cst_13 = arith.constant dense<0.000000e+00> : vector<16x384xf32>
    %27 = tpu.matmul %25, %26, %cst_13 {dimension_numbers = #tpu.dot_dimension_numbers<[1], [0], [0], [1], [0, 0, 1, 1], [], []>} : vector<16x64xbf16>, vector<64x384xbf16>, vector<16x384xf32> -> vector<16x384xf32>
    %28 = vector.extract_strided_slice %27 {offsets = [0, 0], sizes = [16, 64], strides = [1, 1]} : vector<16x384xf32> to vector<16x64xf32>
    %29 = vector.broadcast %1 : vector<1x64xf32> to vector<16x64xf32>
    %30 = arith.addf %28, %29 : vector<16x64xf32>
    %31 = vector.extract_strided_slice %27 {offsets = [0, 128], sizes = [16, 64], strides = [1, 1]} : vector<16x384xf32> to vector<16x64xf32>
    %32 = vector.broadcast %2 : vector<1x64xf32> to vector<16x64xf32>
    %33 = arith.addf %31, %32 : vector<16x64xf32>
    %34 = vector.extract_strided_slice %27 {offsets = [0, 256], sizes = [16, 64], strides = [1, 1]} : vector<16x384xf32> to vector<16x64xf32>
    %35 = vector.broadcast %3 : vector<1x64xf32> to vector<16x64xf32>
    %36 = arith.addf %34, %35 : vector<16x64xf32>
    %37 = arith.truncf %30 : vector<16x64xf32> to vector<16x64xbf16>
    %38 = arith.truncf %33 : vector<16x64xf32> to vector<16x64xbf16>
    %cst_14 = arith.constant dense<0.000000e+00> : vector<16x16xf32>
    %39 = tpu.matmul %37, %38, %cst_14 {dimension_numbers = #tpu.dot_dimension_numbers<[1], [1], [0], [0], [0, 0, 1, 0], [], []>} : vector<16x64xbf16>, vector<16x64xbf16>, vector<16x16xf32> -> vector<16x16xf32>
    %cst_15 = arith.constant dense<0xFF800000> : vector<16xf32>
    %40 = vector.multi_reduction <maximumf>, %39, %cst_15 [1] : vector<16x16xf32> to vector<16xf32>
    %41 = vector.shape_cast %40 : vector<16xf32> to vector<16x1xf32>
    %42 = vector.broadcast %41 : vector<16x1xf32> to vector<16x16xf32>
    %43 = arith.subf %39, %42 : vector<16x16xf32>
    %44 = math.exp %43 : vector<16x16xf32>
    %cst_16 = arith.constant dense<0.000000e+00> : vector<16xf32>
    %45 = vector.multi_reduction <add>, %44, %cst_16 [1] : vector<16x16xf32> to vector<16xf32>
    %46 = vector.shape_cast %45 : vector<16xf32> to vector<16x1xf32>
    %47 = tpu.reciprocal %46 {approx = true} : vector<16x1xf32> -> vector<16x1xf32>
    %48 = vector.broadcast %47 : vector<16x1xf32> to vector<16x16xf32>
    %49 = arith.mulf %44, %48 : vector<16x16xf32>
    %50 = arith.truncf %49 : vector<16x16xf32> to vector<16x16xbf16>
    %51 = arith.truncf %36 : vector<16x64xf32> to vector<16x64xbf16>
    %cst_17 = arith.constant dense<0.000000e+00> : vector<16x64xf32>
    %52 = tpu.matmul %50, %51, %cst_17 {dimension_numbers = #tpu.dot_dimension_numbers<[1], [0], [0], [1], [0, 0, 1, 1], [], []>} : vector<16x16xbf16>, vector<16x64xbf16>, vector<16x64xf32> -> vector<16x64xf32>
    %53 = arith.truncf %52 : vector<16x64xf32> to vector<16x64xbf16>
    %cst_18 = arith.constant dense<0.000000e+00> : vector<16x64xf32>
    %54 = tpu.matmul %53, %11, %cst_18 {dimension_numbers = #tpu.dot_dimension_numbers<[1], [0], [0], [1], [0, 0, 1, 1], [], []>} : vector<16x64xbf16>, vector<64x64xbf16>, vector<16x64xf32> -> vector<16x64xf32>
    %55 = vector.broadcast %4 : vector<1x64xf32> to vector<16x64xf32>
    %56 = arith.addf %54, %55 : vector<16x64xf32>
    %57 = arith.addf %24, %56 : vector<16x64xf32>
    %58 = arith.mulf %57, %57 : vector<16x64xf32>
    %59 = tpu.concatenate %57, %58 in 0 : vector<16x64xf32>, vector<16x64xf32> -> vector<32x64xf32>
    %cst_19 = arith.constant dense<0.000000e+00> : vector<32xf32>
    %60 = vector.multi_reduction <add>, %59, %cst_19 [1] : vector<32x64xf32> to vector<32xf32>
    %61 = vector.shape_cast %60 : vector<32xf32> to vector<32x1xf32>
    %62 = vector.extract_strided_slice %61 {offsets = [0, 0], sizes = [16, 1], strides = [1, 1]} : vector<32x1xf32> to vector<16x1xf32>
    %cst_20 = arith.constant dense<0.000000e+00> : vector<1xf32>
    %63 = vector.multi_reduction <add>, %62, %cst_20 [0] : vector<16x1xf32> to vector<1xf32>
    %64 = vector.shape_cast %63 : vector<1xf32> to vector<1x1xf32>
    %65 = vector.extract_strided_slice %61 {offsets = [16, 0], sizes = [16, 1], strides = [1, 1]} : vector<32x1xf32> to vector<16x1xf32>
    %cst_21 = arith.constant dense<0.000000e+00> : vector<1xf32>
    %66 = vector.multi_reduction <add>, %65, %cst_21 [0] : vector<16x1xf32> to vector<1xf32>
    %67 = vector.shape_cast %66 : vector<1xf32> to vector<1x1xf32>
    %cst_22 = arith.constant 9.765625E-4 : f32
    %68 = vector.broadcast %cst_22 : f32 to vector<1x1xf32>
    %69 = arith.mulf %64, %68 : vector<1x1xf32>
    %cst_23 = arith.constant 1.024000e+03 : f32
    %70 = vector.broadcast %cst_23 : f32 to vector<1x1xf32>
    %71 = arith.mulf %70, %69 : vector<1x1xf32>
    %72 = arith.mulf %71, %69 : vector<1x1xf32>
    %73 = arith.subf %67, %72 : vector<1x1xf32>
    %cst_24 = arith.constant 9.77517105E-4 : f32
    %74 = vector.broadcast %cst_24 : f32 to vector<1x1xf32>
    %75 = arith.mulf %73, %74 : vector<1x1xf32>
    %76 = math.sqrt %75 : vector<1x1xf32>
    %cst_25 = arith.constant 9.99999971E-10 : f32
    %77 = vector.broadcast %cst_25 : f32 to vector<1x1xf32>
    %78 = arith.addf %76, %77 : vector<1x1xf32>
    %cst_26 = arith.constant 1.000000e+00 : f32
    %79 = vector.broadcast %cst_26 : f32 to vector<1x1xf32>
    %80 = arith.divf %79, %78 : vector<1x1xf32>
    %81 = vector.broadcast %69 : vector<1x1xf32> to vector<16x64xf32>
    %82 = arith.subf %57, %81 : vector<16x64xf32>
    %83 = vector.broadcast %80 : vector<1x1xf32> to vector<16x64xf32>
    %84 = arith.mulf %82, %83 : vector<16x64xf32>
    %85 = vector.broadcast %8 : vector<1x64xf32> to vector<16x64xf32>
    %86 = arith.mulf %85, %84 : vector<16x64xf32>
    %87 = vector.broadcast %9 : vector<1x64xf32> to vector<16x64xf32>
    %88 = arith.addf %86, %87 : vector<16x64xf32>
    %89 = arith.truncf %88 : vector<16x64xf32> to vector<16x64xbf16>
    %cst_27 = arith.constant dense<0.000000e+00> : vector<16x64xf32>
    %90 = tpu.matmul %89, %12, %cst_27 {dimension_numbers = #tpu.dot_dimension_numbers<[1], [0], [0], [1], [0, 0, 1, 1], [], []>} : vector<16x64xbf16>, vector<64x64xbf16>, vector<16x64xf32> -> vector<16x64xf32>
    %91 = vector.broadcast %5 : vector<1x64xf32> to vector<16x64xf32>
    %92 = arith.addf %90, %91 : vector<16x64xf32>
    %cst_28 = arith.constant 0.000000e+00 : f32
    %93 = vector.broadcast %cst_28 : f32 to vector<16x64xf32>
    %94 = arith.maximumf %92, %93 : vector<16x64xf32>
    %95 = arith.truncf %94 : vector<16x64xf32> to vector<16x64xbf16>
    %cst_29 = arith.constant dense<0.000000e+00> : vector<16x64xf32>
    %96 = tpu.matmul %95, %13, %cst_29 {dimension_numbers = #tpu.dot_dimension_numbers<[1], [0], [0], [1], [0, 0, 1, 1], [], []>} : vector<16x64xbf16>, vector<64x64xbf16>, vector<16x64xf32> -> vector<16x64xf32>
    %97 = vector.broadcast %6 : vector<1x64xf32> to vector<16x64xf32>
    %98 = arith.addf %96, %97 : vector<16x64xf32>
    %99 = arith.addf %88, %98 : vector<16x64xf32>
    %100 = arith.mulf %99, %99 : vector<16x64xf32>
    %101 = tpu.concatenate %99, %100 in 0 : vector<16x64xf32>, vector<16x64xf32> -> vector<32x64xf32>
    %cst_30 = arith.constant dense<0.000000e+00> : vector<32xf32>
    %102 = vector.multi_reduction <add>, %101, %cst_30 [1] : vector<32x64xf32> to vector<32xf32>
    %103 = vector.shape_cast %102 : vector<32xf32> to vector<32x1xf32>
    %104 = vector.extract_strided_slice %103 {offsets = [0, 0], sizes = [16, 1], strides = [1, 1]} : vector<32x1xf32> to vector<16x1xf32>
    %cst_31 = arith.constant dense<0.000000e+00> : vector<1xf32>
    %105 = vector.multi_reduction <add>, %104, %cst_31 [0] : vector<16x1xf32> to vector<1xf32>
    %106 = vector.shape_cast %105 : vector<1xf32> to vector<1x1xf32>
    %107 = vector.extract_strided_slice %103 {offsets = [16, 0], sizes = [16, 1], strides = [1, 1]} : vector<32x1xf32> to vector<16x1xf32>
    %cst_32 = arith.constant dense<0.000000e+00> : vector<1xf32>
    %108 = vector.multi_reduction <add>, %107, %cst_32 [0] : vector<16x1xf32> to vector<1xf32>
    %109 = vector.shape_cast %108 : vector<1xf32> to vector<1x1xf32>
    %cst_33 = arith.constant 9.765625E-4 : f32
    %110 = vector.broadcast %cst_33 : f32 to vector<1x1xf32>
    %111 = arith.mulf %106, %110 : vector<1x1xf32>
    %cst_34 = arith.constant 1.024000e+03 : f32
    %112 = vector.broadcast %cst_34 : f32 to vector<1x1xf32>
    %113 = arith.mulf %112, %111 : vector<1x1xf32>
    %114 = arith.mulf %113, %111 : vector<1x1xf32>
    %115 = arith.subf %109, %114 : vector<1x1xf32>
    %cst_35 = arith.constant 9.77517105E-4 : f32
    %116 = vector.broadcast %cst_35 : f32 to vector<1x1xf32>
    %117 = arith.mulf %115, %116 : vector<1x1xf32>
    %118 = math.sqrt %117 : vector<1x1xf32>
    %cst_36 = arith.constant 9.99999971E-10 : f32
    %119 = vector.broadcast %cst_36 : f32 to vector<1x1xf32>
    %120 = arith.addf %118, %119 : vector<1x1xf32>
    %cst_37 = arith.constant 1.000000e+00 : f32
    %121 = vector.broadcast %cst_37 : f32 to vector<1x1xf32>
    %122 = arith.divf %121, %120 : vector<1x1xf32>
    %123 = vector.broadcast %111 : vector<1x1xf32> to vector<16x64xf32>
    %124 = arith.subf %99, %123 : vector<16x64xf32>
    %125 = vector.broadcast %122 : vector<1x1xf32> to vector<16x64xf32>
    %126 = arith.mulf %124, %125 : vector<16x64xf32>
    %127 = vector.broadcast %8 : vector<1x64xf32> to vector<16x64xf32>
    %128 = arith.mulf %127, %126 : vector<16x64xf32>
    %129 = vector.broadcast %9 : vector<1x64xf32> to vector<16x64xf32>
    %130 = arith.addf %128, %129 : vector<16x64xf32>
    %131 = arith.truncf %130 : vector<16x64xf32> to vector<16x64xbf16>
    %cst_38 = arith.constant dense<0.000000e+00> : vector<16x128xf32>
    %132 = tpu.matmul %131, %14, %cst_38 {dimension_numbers = #tpu.dot_dimension_numbers<[1], [0], [0], [1], [0, 0, 1, 1], [], []>} : vector<16x64xbf16>, vector<64x128xbf16>, vector<16x128xf32> -> vector<16x128xf32>
    %133 = vector.broadcast %7 : vector<1x128xf32> to vector<16x128xf32>
    %134 = arith.addf %132, %133 : vector<16x128xf32>
    %c0_39 = arith.constant 0 : index
    %c0_40 = arith.constant 0 : index
    %135 = vector.load %arg5[%c0_39, %c0_40] : memref<16x128xf32, #tpu.memory_space<vmem>>, vector<16x128xf32>
    tpu.vector_store %arg5[%c0_39, %c0_40], %134 {strides = array<i32>} : memref<16x128xf32, #tpu.memory_space<vmem>>, vector<16x128xf32>,
    return
  }
}

</mosaic_0001>

<llo_original>
// kernel: transformer_forward.1
$region0: #{transformer_forward.1}
  #allocation0 [shape = 'u32[]', space=smem, size = 0x4, offset = 0x4, fixed_abs, tag = 'smem constant byte address 0x4 - core index']
  #allocation1 [shape = 'u32[72,128]{1,0:T(1,128)}', space=vmem, size = 0x9000, scoped, tag = 'internal scratch']
  %s0 = inlined_call_operand.vmem [shape: s32[16,1], index: 0, kind: input, shape index: {}]
  %s1 = inlined_call_operand.vmem [shape: f32[16,64], index: 1, kind: input, shape index: {}]
  %s2 = inlined_call_operand.hbm [shape: bf16[64,384], index: 2, kind: input, shape index: {}]
  %s3 = inlined_call_operand.hbm [shape: bf16[320,128], index: 3, kind: input, shape index: {}]
  %s4 = inlined_call_operand.hbm [shape: f32[16,128], index: 4, kind: input, shape index: {}]
  %s5 = inlined_call_operand.vmem [shape: f32[16,128], index: 5, kind: output, shape index: {}]
  %s6 = sld [smem:[#allocation0]]
  $region42: #{transformer_forward.1} parent=0
    _
  %s8 = ssub.s32 1, %s6
  %s9 = scalar_select 0, %s8, %s6
  $region1: #{transformer_forward.1} parent=0
    #allocation2 [shape = 'u8[49152]{0}', space=vmem, size = 0xc000, scoped, tag = 'input window, operand 2, single buffered']
    #allocation3 [shape = 's32[1]{0}', space=sflag, size = 0x4, scoped, tag = 'scoped memory for transformer_forward.1']
    #allocation4 [shape = 'u8[81920]{0}', space=vmem, size = 0x14000, scoped, tag = 'input window, operand 3, single buffered']
    #allocation5 [shape = 's32[1]{0}', space=sflag, size = 0x4, scoped, tag = 'scoped memory for transformer_forward.1']
    #allocation6 [shape = 'u8[8192]{0}', space=vmem, size = 0x2000, scoped, tag = 'input window, operand 4, single buffered']
    %10 = vsyncpa [#allocation3], 0
    %11 = vsyncpa [#allocation5], 0
    // Predicated region
    $region2: #{transformer_forward.1} parent=1 // pred_check
      _
    $region3: #{transformer_forward.1} parent=1 // pred_check_branch
      %13 = sbr.rel (0) target = $region5
    $region4: #{transformer_forward.1} parent=1 // pred_region
      _
    $region5: #{transformer_forward.1} parent=1 // pred_fallthru
      _
    // Predicated region
    $region6: #{transformer_forward.1} parent=1 // pred_check
      _
    $region7: #{transformer_forward.1} parent=1 // pred_check_branch
      %15 = sbr.rel (0) target = $region9
    $region8: #{transformer_forward.1} parent=1 // pred_region
      _
    $region9: #{transformer_forward.1} parent=1 // pred_fallthru
      _
    // Predicated region
    $region10: #{transformer_forward.1} parent=1 // pred_check
      _
    $region11: #{transformer_forward.1} parent=1 // pred_check_branch
      %17 = sbr.rel (0) target = $region13
    $region12: #{transformer_forward.1} parent=1 // pred_region
      %19 = vsyncadd [#allocation3], 0
      %s20 = sshll.u32 %s2, 4
      %s21 = int_to_ptr.hbm [resolvable:$true] %s20
      %s22 = sshll.u32 [#allocation2], 4
      %s23 = int_to_ptr.vmem [resolvable:$true] %s22
      %28 = dma.hbm_to_vmem [thread:$0]  %s21, 1536, %s23, [#allocation3], 192, 192, 12
    $region13: #{transformer_forward.1} parent=1 // pred_fallthru
      _
    // Predicated region
    $region14: #{transformer_forward.1} parent=1 // pred_check
      _
    $region15: #{transformer_forward.1} parent=1 // pred_check_branch
      %30 = sbr.rel (0) target = $region17
    $region16: #{transformer_forward.1} parent=1 // pred_region
      %32 = vsyncadd [#allocation5], 0
      %s33 = sshll.u32 %s3, 4
      %s34 = int_to_ptr.hbm [resolvable:$true] %s33
      %s35 = sshll.u32 [#allocation4], 4
      %s36 = int_to_ptr.vmem [resolvable:$true] %s35
      %41 = dma.hbm_to_vmem [thread:$0]  %s34, 2560, %s36, [#allocation5], 64, 64, 4
    $region17: #{transformer_forward.1} parent=1 // pred_fallthru
      _
    // Predicated region
    $region18: #{transformer_forward.1} parent=1 // pred_check
      _
    $region19: #{transformer_forward.1} parent=1 // pred_check_branch
      %43 = sbr.rel (0) target = $region21
    $region20: #{transformer_forward.1} parent=1 // pred_region
      %45 = vsyncadd [#allocation5], 0
      %s46 = sshll.u32 %s4, 4
      %s47 = int_to_ptr.hbm [resolvable:$true] %s46
      %s48 = sshll.u32 [#allocation6], 4
      %s49 = int_to_ptr.vmem [resolvable:$true] %s48
      %54 = dma.hbm_to_vmem [thread:$0]  %s47, 256, %s49, [#allocation5], 128, 128, 8
    $region21: #{transformer_forward.1} parent=1 // pred_fallthru
      _
    // Predicated region
    $region22: #{transformer_forward.1} parent=1 // pred_check
      _
    $region23: #{transformer_forward.1} parent=1 // pred_check_branch
      %56 = sbr.rel (0) target = $region25
    $region24: #{transformer_forward.1} parent=1 // pred_region
      %58 = dma.done [#allocation3], 1536
    $region25: #{transformer_forward.1} parent=1 // pred_fallthru
      _
    // Predicated region
    $region26: #{transformer_forward.1} parent=1 // pred_check
      _
    $region27: #{transformer_forward.1} parent=1 // pred_check_branch
      %60 = sbr.rel (0) target = $region29
    $region28: #{transformer_forward.1} parent=1 // pred_region
      %62 = dma.done [#allocation5], 2560
    $region29: #{transformer_forward.1} parent=1 // pred_fallthru
      _
    // Predicated region
    $region30: #{transformer_forward.1} parent=1 // pred_check
      _
    $region31: #{transformer_forward.1} parent=1 // pred_check_branch
      %64 = sbr.rel (0) target = $region33
    $region32: #{transformer_forward.1} parent=1 // pred_region
      %66 = dma.done [#allocation5], 256
    $region33: #{transformer_forward.1} parent=1 // pred_fallthru
      _
    %v68 = vld [vmem:[#allocation6] sm:$0xff]
    %v69 = vld [vmem:[#allocation6 + $0x8] sm:$0xff]
    %v70 = vld [vmem:[#allocation4] sm:$0xf]
    %v71 = vld [vmem:[#allocation4 + $0x4] sm:$0xf]
    %v72 = vld [vmem:[#allocation4 + $0x8] sm:$0xf]
    %v73 = vld [vmem:[#allocation4 + $0xc] sm:$0xf]
    %v74 = vld [vmem:[#allocation4 + $0x10] sm:$0xf]
    %v75 = vld [vmem:[#allocation4 + $0x14] sm:$0xf]
    %v76 = vld [vmem:[#allocation4 + $0x18] sm:$0xf]
    %v77 = vld [vmem:[#allocation4 + $0x1c] sm:$0xf]
    %v78 = vld [vmem:[#allocation4 + $0x20] sm:$0xf]
    %v79 = vld [vmem:[#allocation4 + $0x24] sm:$0xf]
    %v80 = vld [vmem:[#allocation4 + $0x28] sm:$0xf]
    %v81 = vld [vmem:[#allocation4 + $0x2c] sm:$0xf]
    %v82 = vld [vmem:[#allocation4 + $0x30] sm:$0xf]
    %v83 = vld [vmem:[#allocation4 + $0x34] sm:$0xf]
    %v84 = vld [vmem:[#allocation4 + $0x38] sm:$0xf]
    %v85 = vld [vmem:[#allocation4 + $0x3c] sm:$0xf]
    %v86 = vld [vmem:[#allocation4 + $0x40] sm:$0xf]
    %v87 = vld [vmem:[#allocation4 + $0x44] sm:$0xf]
    %v88 = vld [vmem:[#allocation4 + $0x48] sm:$0xf]
    %v89 = vld [vmem:[#allocation4 + $0x4c] sm:$0xf]
    %v90 = vld [vmem:[#allocation4 + $0x50] sm:$0xf]
    %v91 = vld [vmem:[#allocation4 + $0x54] sm:$0xf]
    %v92 = vld [vmem:[#allocation4 + $0x58] sm:$0xf]
    %v93 = vld [vmem:[#allocation4 + $0x5c] sm:$0xf]
    %v94 = vld [vmem:[#allocation4 + $0x60] sm:$0xf]
    %v95 = vld [vmem:[#allocation4 + $0x64] sm:$0xf]
    %v96 = vld [vmem:[#allocation4 + $0x68] sm:$0xf]
    %v97 = vld [vmem:[#allocation4 + $0x6c] sm:$0xf]
    %v98 = vld [vmem:[#allocation4 + $0x70] sm:$0xf]
    %v99 = vld [vmem:[#allocation4 + $0x74] sm:$0xf]
    %v100 = vld [vmem:[#allocation4 + $0x78] sm:$0xf]
    %v101 = vld [vmem:[#allocation4 + $0x7c] sm:$0xf]
    %v102 = vld [vmem:[#allocation4 + $0x80] sm:$0xf]
    %v103 = vld [vmem:[#allocation4 + $0x84] sm:$0xf]
    %v104 = vld [vmem:[#allocation4 + $0x88] sm:$0xf]
    %v105 = vld [vmem:[#allocation4 + $0x8c] sm:$0xf]
    %v106 = vld [vmem:[#allocation4 + $0x90] sm:$0xf]
    %v107 = vld [vmem:[#allocation4 + $0x94] sm:$0xf]
    %v108 = vld [vmem:[#allocation4 + $0x98] sm:$0xf]
    %v109 = vld [vmem:[#allocation4 + $0x9c] sm:$0xf]
    %v110 = vld [vmem:[%s0] sm:$0xff]
    %v111 = vld [vmem:[%s0 + $0x8] sm:$0xff]
    %v112 = vlaneseq
    %v113 = vand.u32 %v112, 127
    %114 = vset.pattern.permute.xlu0 0
    %115 = vperm.xlu0 %114, %v110
    %v116 = vpop.permute.xlu0 %115
    %117 = vset.pattern.permute.xlu0 0
    %118 = vperm.xlu0 %117, %v111
    %v119 = vpop.permute.xlu0 %118
    %vm120 = vcmp.eq.s32.totalorder %v113, %v116
    %vm121 = vcmp.eq.s32.totalorder %v113, %v119
    %v122 = vsel %vm120, 1, 0
    %v123 = vsel %vm121, 1, 0
    %v124 = vcvt.s32.f32 %v122
    %v125 = vcvt.s32.f32 %v123
    %v126 = vpack.c.bf16 %v125, %v124
    %v127 = vld [vmem:[%s1] sm:$0xff]
    %v128 = vld [vmem:[%s1 + $0x8] sm:$0xff]
    %v137 = vunpack.c.l.b16 %v70
    %v138 = vunpack.c.l.b16 %v71
    %v139 = vunpack.c.l.b16 %v72
    %v140 = vunpack.c.l.b16 %v73
    %v141 = vunpack.c.l.b16 %v74
    %v142 = vunpack.c.l.b16 %v75
    %v143 = vunpack.c.l.b16 %v76
    %v144 = vunpack.c.l.b16 %v77
    %v145 = vpack.c.b16 %v138, %v137
    %v146 = vpack.c.b16 %v140, %v139
    %v147 = vpack.c.b16 %v142, %v141
    %v148 = vpack.c.b16 %v144, %v143
    %vm153 = vcmask 523264
    %v155 = vsel %vm153, %v126, 0
    %157 = vmatpush.bf16.msra.mxu0 0
    %158 = vmatpush.bf16.msra.mxu0 0
    %159 = vmatpush.bf16.msra.mxu0 0
    %160 = vmatpush.bf16.msra.mxu0 0
    %161 = vmatpush.bf16.msra.mxu0 %v148
    %162 = vmatpush.bf16.msra.mxu0 %v147
    %163 = vmatpush.bf16.msra.mxu0 %v146
    %164 = vmatpush.bf16.msra.mxu0 %v145
    %165 = vmatmul.bf16.gmra.mxu0 %v155
    %v166 = vpop.f32.mrf.mxu0
    %v167 = vadd.f32 %v127, %v166
    %v168 = vpop.f32.mrf.mxu0
    %v169 = vadd.f32 %v128, %v168
    %170 = vdwg.mxu0
    %v171 = vpack.c.bf16 %v169, %v167
    %v172 = vld [vmem:[#allocation2] sm:$0xff]
    %v173 = vld [vmem:[#allocation2 + $0x8] sm:$0xf]
    %v174 = vld [vmem:[#allocation2 + $0xc] sm:$0xff]
    %v175 = vld [vmem:[#allocation2 + $0x14] sm:$0xf]
    %v176 = vld [vmem:[#allocation2 + $0x18] sm:$0xff]
    %v177 = vld [vmem:[#allocation2 + $0x20] sm:$0xf]
    %v178 = vld [vmem:[#allocation2 + $0x24] sm:$0xff]
    %v179 = vld [vmem:[#allocation2 + $0x2c] sm:$0xf]
    %v180 = vld [vmem:[#allocation2 + $0x30] sm:$0xff]
    %v181 = vld [vmem:[#allocation2 + $0x38] sm:$0xf]
    %v182 = vld [vmem:[#allocation2 + $0x3c] sm:$0xff]
    %v183 = vld [vmem:[#allocation2 + $0x44] sm:$0xf]
    %v184 = vld [vmem:[#allocation2 + $0x48] sm:$0xff]
    %v185 = vld [vmem:[#allocation2 + $0x50] sm:$0xf]
    %v186 = vld [vmem:[#allocation2 + $0x54] sm:$0xff]
    %v187 = vld [vmem:[#allocation2 + $0x5c] sm:$0xf]
    %v204 = vunpack.c.l.b16 %v172
    %v205 = vunpack.c.h.b16 %v172
    %v206 = vunpack.c.l.b16 %v173
    %v207 = vunpack.c.l.b16 %v174
    %v208 = vunpack.c.h.b16 %v174
    %v209 = vunpack.c.l.b16 %v175
    %v210 = vunpack.c.l.b16 %v176
    %v211 = vunpack.c.h.b16 %v176
    %v212 = vunpack.c.l.b16 %v177
    %v213 = vunpack.c.l.b16 %v178
    %v214 = vunpack.c.h.b16 %v178
    %v215 = vunpack.c.l.b16 %v179
    %v216 = vunpack.c.l.b16 %v180
    %v217 = vunpack.c.h.b16 %v180
    %v218 = vunpack.c.l.b16 %v181
    %v219 = vunpack.c.l.b16 %v182
    %v220 = vunpack.c.h.b16 %v182
    %v221 = vunpack.c.l.b16 %v183
    %v222 = vunpack.c.l.b16 %v184
    %v223 = vunpack.c.h.b16 %v184
    %v224 = vunpack.c.l.b16 %v185
    %v225 = vunpack.c.l.b16 %v186
    %v226 = vunpack.c.h.b16 %v186
    %v227 = vunpack.c.l.b16 %v187
    %v228 = vpack.c.b16 %v207, %v204
    %v229 = vpack.c.b16 %v208, %v205
    %v230 = vpack.c.b16 %v209, %v206
    %v231 = vpack.c.b16 %v213, %v210
    %v232 = vpack.c.b16 %v214, %v211
    %v233 = vpack.c.b16 %v215, %v212
    %v234 = vpack.c.b16 %v219, %v216
    %v235 = vpack.c.b16 %v220, %v217
    %v236 = vpack.c.b16 %v221, %v218
    %v237 = vpack.c.b16 %v225, %v222
    %v238 = vpack.c.b16 %v226, %v223
    %v239 = vpack.c.b16 %v227, %v224
    %v253 = vsel %vm153, %v171, 0
    %255 = vmatpush.bf16.msra.mxu0 0
    %256 = vmatpush.bf16.msra.mxu0 0
    %257 = vmatpush.bf16.msra.mxu0 0
    %258 = vmatpush.bf16.msra.mxu0 0
    %259 = vmatpush.bf16.msra.mxu0 %v237
    %260 = vmatpush.bf16.msra.mxu0 %v234
    %261 = vmatpush.bf16.msra.mxu0 %v231
    %262 = vmatpush.bf16.msra.mxu0 %v228
    %263 = vmatmul.bf16.gmra.mxu0 %v253
    %v264 = vpop.f32.mrf.mxu0
    %v265 = vadd.f32 0.0, %v264
    %v266 = vpop.f32.mrf.mxu0
    %v267 = vadd.f32 0.0, %v266
    %268 = vdwg.mxu0
    %269 = vmatpush.bf16.msra.mxu0 0
    %270 = vmatpush.bf16.msra.mxu0 0
    %271 = vmatpush.bf16.msra.mxu0 0
    %272 = vmatpush.bf16.msra.mxu0 0
    %273 = vmatpush.bf16.msra.mxu0 %v238
    %274 = vmatpush.bf16.msra.mxu0 %v235
    %275 = vmatpush.bf16.msra.mxu0 %v232
    %276 = vmatpush.bf16.msra.mxu0 %v229
    %277 = vmatmul.bf16.gmra.mxu0 %v253
    %v278 = vpop.f32.mrf.mxu0
    %v279 = vadd.f32 0.0, %v278
    %v280 = vpop.f32.mrf.mxu0
    %v281 = vadd.f32 0.0, %v280
    %282 = vdwg.mxu0
    %283 = vmatpush.bf16.msra.mxu0 0
    %284 = vmatpush.bf16.msra.mxu0 0
    %285 = vmatpush.bf16.msra.mxu0 0
    %286 = vmatpush.bf16.msra.mxu0 0
    %287 = vmatpush.bf16.msra.mxu0 %v239
    %288 = vmatpush.bf16.msra.mxu0 %v236
    %289 = vmatpush.bf16.msra.mxu0 %v233
    %290 = vmatpush.bf16.msra.mxu0 %v230
    %291 = vmatmul.bf16.gmra.mxu0 %v253
    %v292 = vpop.f32.mrf.mxu0
    %v293 = vadd.f32 0.0, %v292
    %v294 = vpop.f32.mrf.mxu0
    %v295 = vadd.f32 0.0, %v294
    %296 = vdwg.mxu0
    %v297 = vperm.slane %v68, 0
    %v298 = vadd.f32 %v265, %v297
    %v299 = vadd.f32 %v267, %v297
    %v300 = vperm.slane %v68, 1
    %v301 = vadd.f32 %v279, %v300
    %v302 = vadd.f32 %v281, %v300
    %v303 = vperm.slane %v68, 2
    %v304 = vadd.f32 %v293, %v303
    %v305 = vadd.f32 %v295, %v303
    %v306 = vpack.c.bf16 %v299, %v298
    %v307 = vpack.c.bf16 %v302, %v301
    %v309 = vsel %vm153, %v306, 0
    %v312 = vsel %vm153, %v307, 0
    %314 = vmatpush.bf16.xpose.msra.mxu0 0
    %315 = vmatpush.bf16.xpose.msra.mxu0 0
    %316 = vmatpush.bf16.xpose.msra.mxu0 0
    %317 = vmatpush.bf16.xpose.msra.mxu0 0
    %318 = vmatpush.bf16.xpose.msra.mxu0 0
    %319 = vmatpush.bf16.xpose.msra.mxu0 0
    %320 = vmatpush.bf16.xpose.msra.mxu0 0
    %321 = vmatpush.bf16.xpose.msra.mxu0 %v312
    %322 = vmatmul.bf16.gmra.mxu0 %v309
    %v323 = vpop.f32.mrf.mxu0
    %v324 = vadd.f32 0.0, %v323
    %v325 = vpop.f32.mrf.mxu0
    %v326 = vadd.f32 0.0, %v325
    %327 = vdwg.mxu0
    %vm328 = vcmask 130048
    %v329 = vsel %vm328, %v324, -inf
    %330 = vmax.xlane.f32.xlu0 %v329
    %v331 = vpop.xlane.xlu0 %330
    %v332 = vsel %vm328, %v326, -inf
    %333 = vmax.xlane.f32.xlu0 %v332
    %v334 = vpop.xlane.xlu0 %333
    %v335 = vsub.f32 %v324, %v331
    %v336 = vsub.f32 %v326, %v334
    %v337 = vmul.f32 %v335, 1.442695
    %v338 = vpow.pop %v337
    %v339 = vmul.f32 %v336, 1.442695
    %v340 = vpow.pop %v339
    %v341 = vsel %vm328, %v338, 0.0
    %342 = vadd.xlane.f32.xlu0 %v341
    %v343 = vpop.xlane.xlu0 %342
    %v344 = vsel %vm328, %v340, 0.0
    %345 = vadd.xlane.f32.xlu0 %v344
    %v346 = vpop.xlane.xlu0 %345
    %v347 = vrcp.pop %v343
    %v348 = vrcp.pop %v346
    %v349 = vmul.f32 %v338, %v347
    %v350 = vmul.f32 %v340, %v348
    %v351 = vpack.c.bf16 %v350, %v349
    %v352 = vpack.c.bf16 %v305, %v304
    %v354 = vsel %vm328, %v351, 0
    %356 = vmatpush.bf16.msra.mxu0 0
    %357 = vmatpush.bf16.msra.mxu0 0
    %358 = vmatpush.bf16.msra.mxu0 0
    %359 = vmatpush.bf16.msra.mxu0 0
    %360 = vmatpush.bf16.msra.mxu0 0
    %361 = vmatpush.bf16.msra.mxu0 0
    %362 = vmatpush.bf16.msra.mxu0 0
    %363 = vmatpush.bf16.msra.mxu0 %v352
    %364 = vmatmul.bf16.gmra.mxu0 %v354
    %v365 = vpop.f32.mrf.mxu0
    %v366 = vadd.f32 0.0, %v365
    %v367 = vpop.f32.mrf.mxu0
    %v368 = vadd.f32 0.0, %v367
    %369 = vdwg.mxu0
    %v370 = vpack.c.bf16 %v368, %v366
    %v371 = vperm.slane %v68, 3
    %v380 = vunpack.c.l.b16 %v78
    %v381 = vunpack.c.l.b16 %v79
    %v382 = vunpack.c.l.b16 %v80
    %v383 = vunpack.c.l.b16 %v81
    %v384 = vunpack.c.l.b16 %v82
    %v385 = vunpack.c.l.b16 %v83
    %v386 = vunpack.c.l.b16 %v84
    %v387 = vunpack.c.l.b16 %v85
    %v388 = vpack.c.b16 %v381, %v380
    %v389 = vpack.c.b16 %v383, %v382
    %v390 = vpack.c.b16 %v385, %v384
    %v391 = vpack.c.b16 %v387, %v386
    %v397 = vsel %vm153, %v370, 0
    %399 = vmatpush.bf16.msra.mxu0 0
    %400 = vmatpush.bf16.msra.mxu0 0
    %401 = vmatpush.bf16.msra.mxu0 0
    %402 = vmatpush.bf16.msra.mxu0 0
    %403 = vmatpush.bf16.msra.mxu0 %v391
    %404 = vmatpush.bf16.msra.mxu0 %v390
    %405 = vmatpush.bf16.msra.mxu0 %v389
    %406 = vmatpush.bf16.msra.mxu0 %v388
    %407 = vmatmul.bf16.gmra.mxu0 %v397
    %v408 = vpop.f32.mrf.mxu0
    %v409 = vadd.f32 %v371, %v408
    %v410 = vpop.f32.mrf.mxu0
    %v411 = vadd.f32 %v371, %v410
    %412 = vdwg.mxu0
    %v413 = vadd.f32 %v167, %v409
    %v414 = vadd.f32 %v169, %v411
    %v415 = vmul.f32 %v413, %v413
    %v416 = vmul.f32 %v414, %v414
    %v417 = vsel %vm153, %v413, 0.0
    %418 = vadd.xlane.f32.xlu0 %v417
    %v419 = vpop.xlane.xlu0 %418
    %v420 = vsel %vm153, %v414, 0.0
    %421 = vadd.xlane.f32.xlu0 %v420
    %v422 = vpop.xlane.xlu0 %421
    %v423 = vsel %vm153, %v415, 0.0
    %424 = vadd.xlane.f32.xlu0 %v423
    %v425 = vpop.xlane.xlu0 %424
    %v426 = vsel %vm153, %v416, 0.0
    %427 = vadd.xlane.f32.xlu0 %v426
    %v428 = vpop.xlane.xlu0 %427
    %v429 = vadd.f32 %v419, %v422
    %v430 = vrot.slane %v429, 4
    %v431 = vadd.f32 %v429, %v430
    %v432 = vrot.slane %v431, 2
    %v433 = vadd.f32 %v431, %v432
    %v434 = vrot.slane %v433, 1
    %v435 = vadd.f32 %v433, %v434
    %v436 = vadd.f32 %v425, %v428
    %v437 = vrot.slane %v436, 4
    %v438 = vadd.f32 %v436, %v437
    %v439 = vrot.slane %v438, 2
    %v440 = vadd.f32 %v438, %v439
    %v441 = vrot.slane %v440, 1
    %v442 = vadd.f32 %v440, %v441
    %v443 = vmul.f32 %v435, 0.0009765625
    %v444 = vmul.f32 %v443, 1024.0
    %v445 = vmul.f32 %v444, %v443
    %v446 = vsub.f32 %v442, %v445
    %v447 = vmul.f32 %v446, 0.0009775171
    %v448 = vrsqrt.pop %v447
    %v449 = vmul.f32 %v448, %v447
    %v450 = vmul.f32 %v449, %v448
    %v451 = vmul.f32 0.5, %v450
    %v452 = vsub.f32 1.5, %v451
    %v453 = vmul.f32 %v448, %v452
    %v454 = vmul.f32 %v447, %v453
    %vm455 = vcmp.eq.f32.partialorder %v447, inf
    %v456 = vsel %vm455, %v447, %v454
    %vm457 = vcmp.eq.f32.partialorder %v447, 0.0
    %v458 = vand.u32 %v447, 2147483648
    %v459 = vsel %vm457, %v458, %v456
    %v460 = vadd.f32 %v459, 1e-09
    %v461 = vrcp.pop %v460
    %v462 = vmul.f32 %v460, %v461
    %v463 = vsub.f32 1.0, %v462
    %v464 = vmul.f32 %v461, %v463
    %v465 = vadd.f32 %v461, %v464
    %vm466 = vweird.f32 %v460
    %vm467 = vweird.f32 %v461
    %vm468 = vmor %vm466, %vm467
    %v469 = vsel %vm468, %v461, %v465
    %v470 = vand.u32 2147483647, %v460
    %vm471 = vcmp.eq.f32.partialorder %v470, 8.507059e+37
    %v472 = vand.u32 %v460, 2147483648
    %v473 = vor.u32 1.1754944e-38, %v472
    %v474 = vsel %vm471, %v473, %v469
    %v475 = vmul.f32 1.0, %v474
    %v476 = vsub.f32 %v413, %v443
    %v477 = vsub.f32 %v414, %v443
    %v478 = vmul.f32 %v476, %v475
    %v479 = vmul.f32 %v477, %v475
    %v480 = vperm.slane %v68, 7
    %v481 = vmul.f32 %v480, %v478
    %v482 = vmul.f32 %v480, %v479
    %v483 = vperm.slane %v69, 0
    %v484 = vadd.f32 %v481, %v483
    %v485 = vadd.f32 %v482, %v483
    %v486 = vpack.c.bf16 %v485, %v484
    %v487 = vperm.slane %v68, 4
    %v496 = vunpack.c.l.b16 %v86
    %v497 = vunpack.c.l.b16 %v87
    %v498 = vunpack.c.l.b16 %v88
    %v499 = vunpack.c.l.b16 %v89
    %v500 = vunpack.c.l.b16 %v90
    %v501 = vunpack.c.l.b16 %v91
    %v502 = vunpack.c.l.b16 %v92
    %v503 = vunpack.c.l.b16 %v93
    %v504 = vpack.c.b16 %v497, %v496
    %v505 = vpack.c.b16 %v499, %v498
    %v506 = vpack.c.b16 %v501, %v500
    %v507 = vpack.c.b16 %v503, %v502
    %v513 = vsel %vm153, %v486, 0
    %515 = vmatpush.bf16.msra.mxu0 0
    %516 = vmatpush.bf16.msra.mxu0 0
    %517 = vmatpush.bf16.msra.mxu0 0
    %518 = vmatpush.bf16.msra.mxu0 0
    %519 = vmatpush.bf16.msra.mxu0 %v507
    %520 = vmatpush.bf16.msra.mxu0 %v506
    %521 = vmatpush.bf16.msra.mxu0 %v505
    %522 = vmatpush.bf16.msra.mxu0 %v504
    %523 = vmatmul.bf16.gmra.mxu0 %v513
    %v524 = vpop.f32.mrf.mxu0
    %v525 = vadd.f32 %v487, %v524
    %v526 = vpop.f32.mrf.mxu0
    %v527 = vadd.f32 %v487, %v526
    %528 = vdwg.mxu0
    %v529 = vmax.f32 %v525, 0.0
    %v530 = vmax.f32 %v527, 0.0
    %v531 = vpack.c.bf16 %v530, %v529
    %v532 = vperm.slane %v68, 5
    %v541 = vunpack.c.l.b16 %v94
    %v542 = vunpack.c.l.b16 %v95
    %v543 = vunpack.c.l.b16 %v96
    %v544 = vunpack.c.l.b16 %v97
    %v545 = vunpack.c.l.b16 %v98
    %v546 = vunpack.c.l.b16 %v99
    %v547 = vunpack.c.l.b16 %v100
    %v548 = vunpack.c.l.b16 %v101
    %v549 = vpack.c.b16 %v542, %v541
    %v550 = vpack.c.b16 %v544, %v543
    %v551 = vpack.c.b16 %v546, %v545
    %v552 = vpack.c.b16 %v548, %v547
    %v558 = vsel %vm153, %v531, 0
    %560 = vmatpush.bf16.msra.mxu0 0
    %561 = vmatpush.bf16.msra.mxu0 0
    %562 = vmatpush.bf16.msra.mxu0 0
    %563 = vmatpush.bf16.msra.mxu0 0
    %564 = vmatpush.bf16.msra.mxu0 %v552
    %565 = vmatpush.bf16.msra.mxu0 %v551
    %566 = vmatpush.bf16.msra.mxu0 %v550
    %567 = vmatpush.bf16.msra.mxu0 %v549
    %568 = vmatmul.bf16.gmra.mxu0 %v558
    %v569 = vpop.f32.mrf.mxu0
    %v570 = vadd.f32 %v532, %v569
    %v571 = vpop.f32.mrf.mxu0
    %v572 = vadd.f32 %v532, %v571
    %573 = vdwg.mxu0
    %v574 = vadd.f32 %v484, %v570
    %v575 = vadd.f32 %v485, %v572
    %v576 = vmul.f32 %v574, %v574
    %v577 = vmul.f32 %v575, %v575
    %v578 = vsel %vm153, %v574, 0.0
    %579 = vadd.xlane.f32.xlu0 %v578
    %v580 = vpop.xlane.xlu0 %579
    %v581 = vsel %vm153, %v575, 0.0
    %582 = vadd.xlane.f32.xlu0 %v581
    %v583 = vpop.xlane.xlu0 %582
    %v584 = vsel %vm153, %v576, 0.0
    %585 = vadd.xlane.f32.xlu0 %v584
    %v586 = vpop.xlane.xlu0 %585
    %v587 = vsel %vm153, %v577, 0.0
    %588 = vadd.xlane.f32.xlu0 %v587
    %v589 = vpop.xlane.xlu0 %588
    %v590 = vadd.f32 %v580, %v583
    %v591 = vrot.slane %v590, 4
    %v592 = vadd.f32 %v590, %v591
    %v593 = vrot.slane %v592, 2
    %v594 = vadd.f32 %v592, %v593
    %v595 = vrot.slane %v594, 1
    %v596 = vadd.f32 %v594, %v595
    %v597 = vadd.f32 %v586, %v589
    %v598 = vrot.slane %v597, 4
    %v599 = vadd.f32 %v597, %v598
    %v600 = vrot.slane %v599, 2
    %v601 = vadd.f32 %v599, %v600
    %v602 = vrot.slane %v601, 1
    %v603 = vadd.f32 %v601, %v602
    %v604 = vmul.f32 %v596, 0.0009765625
    %v605 = vmul.f32 %v604, 1024.0
    %v606 = vmul.f32 %v605, %v604
    %v607 = vsub.f32 %v603, %v606
    %v608 = vmul.f32 %v607, 0.0009775171
    %v609 = vrsqrt.pop %v608
    %v610 = vmul.f32 %v609, %v608
    %v611 = vmul.f32 %v610, %v609
    %v612 = vmul.f32 0.5, %v611
    %v613 = vsub.f32 1.5, %v612
    %v614 = vmul.f32 %v609, %v613
    %v615 = vmul.f32 %v608, %v614
    %vm616 = vcmp.eq.f32.partialorder %v608, inf
    %v617 = vsel %vm616, %v608, %v615
    %vm618 = vcmp.eq.f32.partialorder %v608, 0.0
    %v619 = vand.u32 %v608, 2147483648
    %v620 = vsel %vm618, %v619, %v617
    %v621 = vadd.f32 %v620, 1e-09
    %v622 = vrcp.pop %v621
    %v623 = vmul.f32 %v621, %v622
    %v624 = vsub.f32 1.0, %v623
    %v625 = vmul.f32 %v622, %v624
    %v626 = vadd.f32 %v622, %v625
    %vm627 = vweird.f32 %v621
    %vm628 = vweird.f32 %v622
    %vm629 = vmor %vm627, %vm628
    %v630 = vsel %vm629, %v622, %v626
    %v631 = vand.u32 2147483647, %v621
    %vm632 = vcmp.eq.f32.partialorder %v631, 8.507059e+37
    %v633 = vand.u32 %v621, 2147483648
    %v634 = vor.u32 1.1754944e-38, %v633
    %v635 = vsel %vm632, %v634, %v630
    %v636 = vmul.f32 1.0, %v635
    %v637 = vsub.f32 %v574, %v604
    %v638 = vsub.f32 %v575, %v604
    %v639 = vmul.f32 %v637, %v636
    %v640 = vmul.f32 %v638, %v636
    %v641 = vmul.f32 %v480, %v639
    %v642 = vmul.f32 %v480, %v640
    %v643 = vadd.f32 %v641, %v483
    %v644 = vadd.f32 %v642, %v483
    %v645 = vpack.c.bf16 %v644, %v643
    %v646 = vperm.slane %v68, 6
    %v655 = vunpack.c.l.b16 %v102
    %v656 = vunpack.c.l.b16 %v103
    %v657 = vunpack.c.l.b16 %v104
    %v658 = vunpack.c.l.b16 %v105
    %v659 = vunpack.c.l.b16 %v106
    %v660 = vunpack.c.l.b16 %v107
    %v661 = vunpack.c.l.b16 %v108
    %v662 = vunpack.c.l.b16 %v109
    %v663 = vpack.c.b16 %v656, %v655
    %v664 = vpack.c.b16 %v658, %v657
    %v665 = vpack.c.b16 %v660, %v659
    %v666 = vpack.c.b16 %v662, %v661
    %v672 = vsel %vm153, %v645, 0
    %674 = vmatpush.bf16.msra.mxu0 0
    %675 = vmatpush.bf16.msra.mxu0 0
    %676 = vmatpush.bf16.msra.mxu0 0
    %677 = vmatpush.bf16.msra.mxu0 0
    %678 = vmatpush.bf16.msra.mxu0 %v666
    %679 = vmatpush.bf16.msra.mxu0 %v665
    %680 = vmatpush.bf16.msra.mxu0 %v664
    %681 = vmatpush.bf16.msra.mxu0 %v663
    %682 = vmatmul.bf16.gmra.mxu0 %v672
    %v683 = vpop.f32.mrf.mxu0
    %v684 = vadd.f32 %v646, %v683
    %v685 = vpop.f32.mrf.mxu0
    %v686 = vadd.f32 %v646, %v685
    %687 = vdwg.mxu0
    %688 = vst [vmem:[%s5] sm:$0xff] %v684
    %689 = vst [vmem:[%s5 + $0x8] sm:$0xff] %v686
    // Predicated region
    $region34: #{transformer_forward.1} parent=1 // pred_check
      _
    $region35: #{transformer_forward.1} parent=1 // pred_check_branch
      %691 = sbr.rel (0) target = $region37
    $region36: #{transformer_forward.1} parent=1 // pred_region
      _
    $region37: #{transformer_forward.1} parent=1 // pred_fallthru
      _
    // Predicated region
    $region38: #{transformer_forward.1} parent=1 // pred_check
      _
    $region39: #{transformer_forward.1} parent=1 // pred_check_branch
      %693 = sbr.rel (0) target = $region41
    $region40: #{transformer_forward.1} parent=1 // pred_region
      _
    $region41: #{transformer_forward.1} parent=1 // pred_fallthru
      _
    %694 = vsyncpa [#allocation3], 1
    %695 = vsyncpa [#allocation5], 1

</llo_original>
